<compile_context>
chip_gen: v7x
topology: tpu7x:2x2x1
jax: 0.10.0
libtpu: 0.0.40
codegen_flags: <defaults>
</compile_context>

<pallas_src>
import functools

import jax
import jax.numpy as jnp
from jax.experimental import pallas as pl
from jax.experimental.pallas import tpu as pltpu

INF = float("inf")


def _make_kernel(ks, stride, Ho, Wo, Wp):
    """Kernel closure over the static pooling geometry.

    xp_ref : (s, s, Rh, Rw, Cblk)  phase-split, channel-last padded image block
             xp_ref[sh, sw, rh, rw, nc] = padded[rh*s+sh, rw*s+sw] for image nc
    out_ref: (Ho, Wo, Cblk)  pooled values
    idx_ref: (Ho, Wo, Cblk)  flat argmax indices into the (Hp, Wp) padded image
    """

    def kernel(xp_ref, out_ref, idx_ref):
        def load(ki, kj):
            qr, sr = divmod(ki, stride)
            qc, sc = divmod(kj, stride)
            # window[oh, ow, :] = padded[oh*s + ki, ow*s + kj, :]
            w = xp_ref[sr, sc, pl.ds(qr, Ho), pl.ds(qc, Wo), :]
            if w.dtype != jnp.float32:
                # Keep the compare path in f32 (required on v5e: no bf16 VPU).
                w = w.astype(jnp.float32)
            return w

        # First window offset initializes the running max; strict '>' below means
        # the FIRST maximum (row-major window scan) wins ties, matching PyTorch.
        best = load(0, 0)
        bofs = jnp.zeros(best.shape, dtype=jnp.int32)  # ki*Wp + kj of the winner

        for ki in range(ks):
            for kj in range(ks):
                if ki == 0 and kj == 0:
                    continue
                win = load(ki, kj)
                take = win > best  # TODO(synk): NaNs are skipped here; torch propagates NaN.
                off = ki * Wp + kj  # python-int constant -> folded into the select
                bofs = jnp.where(take, off, bofs)
                best = jnp.where(take, win, best)

        # base[oh, ow] = (oh*s)*Wp + (ow*s); added once at the end.
        row0 = jax.lax.broadcasted_iota(jnp.int32, (Ho, Wo, 1), 0) * (stride * Wp)
        col0 = jax.lax.broadcasted_iota(jnp.int32, (Ho, Wo, 1), 1) * stride

        out_ref[...] = best.astype(out_ref.dtype)
        idx_ref[...] = bofs + row0 + col0

    return kernel


@functools.partial(jax.jit, static_argnames=("kernel_size", "stride"))
def baseline_pool2d(x, kernel_size=3, stride=2):
    """x: (N, C, H, W).  Returns (pooled, indices) like BaselinePool2D.forward.

    indices are flat offsets into the -inf padded (Hp, Wp) image, per (n, c).
    (Returned as int32 instead of torch's int64 — sufficient for realistic maps.)
    """
    N, C, H, W = x.shape
    ks, s = kernel_size, stride

    # Same padding rule as the PyTorch module (F.pad order: left, right, top, bottom).
    if ks % 2 == 0:
        left, right, top, bottom = 0, ks // 2, 0, ks // 2
    else:
        left = right = top = bottom = ks // 2

    Hp, Wp = H + top + bottom, W + left + right
    Ho, Wo = (Hp - ks) // s + 1, (Wp - ks) // s + 1
    Rh, Rw = Ho + (ks - 1) // s, Wo + (ks - 1) // s
    Hext, Wext = s * Rh, s * Rw

    NC = N * C
    in_item = jnp.dtype(x.dtype).itemsize

    # Lane-block (channel-block) selection: keep lanes dense, blocks big enough to
    # amortize pipeline overhead, and double-buffered VMEM comfortably under budget
    # (also safe for v7x's 64 MiB physical VMEM).
    per_lane_bytes = s * s * Rh * Rw * in_item + Ho * Wo * (in_item + 4)
    if NC <= 128:
        Cblk = NC
        NCp = NC
    else:
        budget = 8 * 1024 * 1024
        base = ((NC + 127) // 128) * 128
        Cblk = 128
        for cb in (512, 256):
            if base % cb == 0 and cb * per_lane_bytes <= budget:
                Cblk = cb
                break
        NCp = ((NC + Cblk - 1) // Cblk) * Cblk

    # --- glue pass 1: single -inf pad directly to the extended geometry ---
    eh, ew = Hext - Hp, Wext - Wp
    xp = jnp.pad(
        x,
        ((0, 0), (0, 0), (top, bottom + max(0, eh)), (left, right + max(0, ew))),
        constant_values=-INF,
    )[:, :, :Hext, :Wext]

    # --- glue pass 2: phase-split, channel-last layout (lane axis = N*C) ---
    # y[sh, sw, rh, rw, n*C + c] = padded[n, c, rh*s + sh, rw*s + sw]
    y = (
        xp.reshape(N, C, Rh, s, Rw, s)
        .transpose(3, 5, 2, 4, 0, 1)
        .reshape(s, s, Rh, Rw, NC)
    )
    if NCp > NC:
        y = jnp.pad(y, ((0, 0),) * 4 + ((0, NCp - NC),), constant_values=-INF)

    kernel = _make_kernel(ks, s, Ho, Wo, Wp)

    pooled_l, idx_l = pl.pallas_call(
        kernel,
        out_shape=(
            jax.ShapeDtypeStruct((Ho, Wo, NCp), x.dtype),
            jax.ShapeDtypeStruct((Ho, Wo, NCp), jnp.int32),
        ),
        grid=(NCp // Cblk,),
        in_specs=[
            pl.BlockSpec((s, s, Rh, Rw, Cblk), lambda b: (0, 0, 0, 0, b)),
        ],
        out_specs=(
            pl.BlockSpec((Ho, Wo, Cblk), lambda b: (0, 0, b)),
            pl.BlockSpec((Ho, Wo, Cblk), lambda b: (0, 0, b)),
        ),
        compiler_params=pltpu.CompilerParams(
            dimension_semantics=("parallel",),
            vmem_limit_bytes=48 * 1024 * 1024,
        ),
    )(y)

    # Back to NCHW (small outputs, ~s^2 smaller than the input).
    pooled = pooled_l[:, :, :NC].reshape(Ho, Wo, N, C).transpose(2, 3, 0, 1)
    idx = idx_l[:, :, :NC].reshape(Ho, Wo, N, C).transpose(2, 3, 0, 1)
    # TODO(synk): very large spatial maps would also want an H-tile grid axis.
    return pooled, idx


if __name__ == "__main__":
    key = jax.random.PRNGKey(0)
    x = jax.random.normal(key, (2, 4, 16, 16), dtype=jnp.float32)

    pooled, ind = baseline_pool2d(x, kernel_size=3, stride=2)
    jax.block_until_ready((pooled, ind))

    # --- sanity checks against a pure-JAX reference of the PyTorch semantics ---
    pad = 1  # ks=3 (odd) -> symmetric pad of 1 on all sides
    xp_ref = jnp.pad(
        x, ((0, 0), (0, 0), (pad, pad), (pad, pad)), constant_values=-INF
    )
    ref_pooled = jax.lax.reduce_window(
        xp_ref, -INF, jax.lax.max, (1, 1, 3, 3), (1, 1, 2, 2), "VALID"
    )
    assert pooled.shape == ref_pooled.shape
    assert jnp.allclose(pooled, ref_pooled), "pooled values mismatch"

    # indices must point at the max value inside the padded image
    N, C = x.shape[0], x.shape[1]
    xp_flat = xp_ref.reshape(N, C, -1)
    gathered = jnp.take_along_axis(
        xp_flat, ind.reshape(N, C, -1), axis=2
    ).reshape(pooled.shape)
    assert jnp.allclose(pooled, gathered), "indices do not point at max values"

    # TODO(synk): PyTorch returns int64 indices; int32 is used here (sufficient for these sizes).
    print("KERNEL_OK")
</pallas_src>

<mosaic_0001>
module attributes {stable_mosaic.version = 11 : i64} {
  func.func @kernel(%arg0: i32, %arg1: memref<2x2x9x9x8xf32, #tpu.memory_space<vmem>>, %arg2: memref<8x8x8xf32, #tpu.memory_space<vmem>>, %arg3: memref<8x8x8xi32, #tpu.memory_space<vmem>>) attributes {dimension_semantics = [#tpu.dimension_semantics<parallel>], iteration_bounds = array<i64: 1>, scalar_prefetch = 0 : i64, scratch_operands = 0 : i64, tpu.core_type = #tpu.core_type<tc>, window_params = [{transform_indices = @transform_0, window_bounds = array<i64: 2, 2, 9, 9, 8>}, {transform_indices = @transform_1, window_bounds = array<i64: 8, 8, 8>}, {transform_indices = @transform_2, window_bounds = array<i64: 8, 8, 8>}]} {
    %c0 = arith.constant 0 : index
    %c0_0 = arith.constant 0 : index
    %c0_1 = arith.constant 0 : index
    %c0_2 = arith.constant 0 : index
    %c0_3 = arith.constant 0 : index
    %0 = vector.load %arg1[%c0, %c0_0, %c0_1, %c0_2, %c0_3] : memref<2x2x9x9x8xf32, #tpu.memory_space<vmem>>, vector<1x1x8x8x8xf32>
    %1 = vector.shape_cast %0 : vector<1x1x8x8x8xf32> to vector<8x8x8xf32>
    %c0_i32 = arith.constant 0 : i32
    %2 = vector.broadcast %c0_i32 : i32 to vector<8x8x8xi32>
    %c0_4 = arith.constant 0 : index
    %c1 = arith.constant 1 : index
    %c0_5 = arith.constant 0 : index
    %c0_6 = arith.constant 0 : index
    %c0_7 = arith.constant 0 : index
    %3 = vector.load %arg1[%c0_4, %c1, %c0_5, %c0_6, %c0_7] : memref<2x2x9x9x8xf32, #tpu.memory_space<vmem>>, vector<1x1x8x8x8xf32>
    %4 = vector.shape_cast %3 : vector<1x1x8x8x8xf32> to vector<8x8x8xf32>
    %5 = arith.cmpf ogt, %4, %1 : vector<8x8x8xf32>
    %c1_i32 = arith.constant 1 : i32
    %6 = vector.broadcast %c1_i32 : i32 to vector<8x8x8xi32>
    %7 = arith.select %5, %6, %2 : vector<8x8x8xi1>, vector<8x8x8xi32>
    %8 = arith.select %5, %4, %1 : vector<8x8x8xi1>, vector<8x8x8xf32>
    %c0_8 = arith.constant 0 : index
    %c0_9 = arith.constant 0 : index
    %c0_10 = arith.constant 0 : index
    %c1_11 = arith.constant 1 : index
    %c0_12 = arith.constant 0 : index
    %9 = vector.load %arg1[%c0_8, %c0_9, %c0_10, %c1_11, %c0_12] : memref<2x2x9x9x8xf32, #tpu.memory_space<vmem>>, vector<1x1x8x8x8xf32>
    %10 = vector.shape_cast %9 : vector<1x1x8x8x8xf32> to vector<8x8x8xf32>
    %11 = arith.cmpf ogt, %10, %8 : vector<8x8x8xf32>
    %c2_i32 = arith.constant 2 : i32
    %12 = vector.broadcast %c2_i32 : i32 to vector<8x8x8xi32>
    %13 = arith.select %11, %12, %7 : vector<8x8x8xi1>, vector<8x8x8xi32>
    %14 = arith.select %11, %10, %8 : vector<8x8x8xi1>, vector<8x8x8xf32>
    %c1_13 = arith.constant 1 : index
    %c0_14 = arith.constant 0 : index
    %c0_15 = arith.constant 0 : index
    %c0_16 = arith.constant 0 : index
    %c0_17 = arith.constant 0 : index
    %15 = vector.load %arg1[%c1_13, %c0_14, %c0_15, %c0_16, %c0_17] : memref<2x2x9x9x8xf32, #tpu.memory_space<vmem>>, vector<1x1x8x8x8xf32>
    %16 = vector.shape_cast %15 : vector<1x1x8x8x8xf32> to vector<8x8x8xf32>
    %17 = arith.cmpf ogt, %16, %14 : vector<8x8x8xf32>
    %c18_i32 = arith.constant 18 : i32
    %18 = vector.broadcast %c18_i32 : i32 to vector<8x8x8xi32>
    %19 = arith.select %17, %18, %13 : vector<8x8x8xi1>, vector<8x8x8xi32>
    %20 = arith.select %17, %16, %14 : vector<8x8x8xi1>, vector<8x8x8xf32>
    %c1_18 = arith.constant 1 : index
    %c1_19 = arith.constant 1 : index
    %c0_20 = arith.constant 0 : index
    %c0_21 = arith.constant 0 : index
    %c0_22 = arith.constant 0 : index
    %21 = vector.load %arg1[%c1_18, %c1_19, %c0_20, %c0_21, %c0_22] : memref<2x2x9x9x8xf32, #tpu.memory_space<vmem>>, vector<1x1x8x8x8xf32>
    %22 = vector.shape_cast %21 : vector<1x1x8x8x8xf32> to vector<8x8x8xf32>
    %23 = arith.cmpf ogt, %22, %20 : vector<8x8x8xf32>
    %c19_i32 = arith.constant 19 : i32
    %24 = vector.broadcast %c19_i32 : i32 to vector<8x8x8xi32>
    %25 = arith.select %23, %24, %19 : vector<8x8x8xi1>, vector<8x8x8xi32>
    %26 = arith.select %23, %22, %20 : vector<8x8x8xi1>, vector<8x8x8xf32>
    %c1_23 = arith.constant 1 : index
    %c0_24 = arith.constant 0 : index
    %c0_25 = arith.constant 0 : index
    %c1_26 = arith.constant 1 : index
    %c0_27 = arith.constant 0 : index
    %27 = vector.load %arg1[%c1_23, %c0_24, %c0_25, %c1_26, %c0_27] : memref<2x2x9x9x8xf32, #tpu.memory_space<vmem>>, vector<1x1x8x8x8xf32>
    %28 = vector.shape_cast %27 : vector<1x1x8x8x8xf32> to vector<8x8x8xf32>
    %29 = arith.cmpf ogt, %28, %26 : vector<8x8x8xf32>
    %c20_i32 = arith.constant 20 : i32
    %30 = vector.broadcast %c20_i32 : i32 to vector<8x8x8xi32>
    %31 = arith.select %29, %30, %25 : vector<8x8x8xi1>, vector<8x8x8xi32>
    %32 = arith.select %29, %28, %26 : vector<8x8x8xi1>, vector<8x8x8xf32>
    %c0_28 = arith.constant 0 : index
    %c0_29 = arith.constant 0 : index
    %c1_30 = arith.constant 1 : index
    %c0_31 = arith.constant 0 : index
    %c0_32 = arith.constant 0 : index
    %33 = vector.load %arg1[%c0_28, %c0_29, %c1_30, %c0_31, %c0_32] : memref<2x2x9x9x8xf32, #tpu.memory_space<vmem>>, vector<1x1x8x8x8xf32>
    %34 = vector.shape_cast %33 : vector<1x1x8x8x8xf32> to vector<8x8x8xf32>
    %35 = arith.cmpf ogt, %34, %32 : vector<8x8x8xf32>
    %c36_i32 = arith.constant 36 : i32
    %36 = vector.broadcast %c36_i32 : i32 to vector<8x8x8xi32>
    %37 = arith.select %35, %36, %31 : vector<8x8x8xi1>, vector<8x8x8xi32>
    %38 = arith.select %35, %34, %32 : vector<8x8x8xi1>, vector<8x8x8xf32>
    %c0_33 = arith.constant 0 : index
    %c1_34 = arith.constant 1 : index
    %c1_35 = arith.constant 1 : index
    %c0_36 = arith.constant 0 : index
    %c0_37 = arith.constant 0 : index
    %39 = vector.load %arg1[%c0_33, %c1_34, %c1_35, %c0_36, %c0_37] : memref<2x2x9x9x8xf32, #tpu.memory_space<vmem>>, vector<1x1x8x8x8xf32>
    %40 = vector.shape_cast %39 : vector<1x1x8x8x8xf32> to vector<8x8x8xf32>
    %41 = arith.cmpf ogt, %40, %38 : vector<8x8x8xf32>
    %c37_i32 = arith.constant 37 : i32
    %42 = vector.broadcast %c37_i32 : i32 to vector<8x8x8xi32>
    %43 = arith.select %41, %42, %37 : vector<8x8x8xi1>, vector<8x8x8xi32>
    %44 = arith.select %41, %40, %38 : vector<8x8x8xi1>, vector<8x8x8xf32>
    %c0_38 = arith.constant 0 : index
    %c0_39 = arith.constant 0 : index
    %c1_40 = arith.constant 1 : index
    %c1_41 = arith.constant 1 : index
    %c0_42 = arith.constant 0 : index
    %45 = vector.load %arg1[%c0_38, %c0_39, %c1_40, %c1_41, %c0_42] : memref<2x2x9x9x8xf32, #tpu.memory_space<vmem>>, vector<1x1x8x8x8xf32>
    %46 = vector.shape_cast %45 : vector<1x1x8x8x8xf32> to vector<8x8x8xf32>
    %47 = arith.cmpf ogt, %46, %44 : vector<8x8x8xf32>
    %c38_i32 = arith.constant 38 : i32
    %48 = vector.broadcast %c38_i32 : i32 to vector<8x8x8xi32>
    %49 = arith.select %47, %48, %43 : vector<8x8x8xi1>, vector<8x8x8xi32>
    %50 = arith.select %47, %46, %44 : vector<8x8x8xi1>, vector<8x8x8xf32>
    %51 = tpu.iota {dimensions = array<i32: 0>} : vector<8x8x1xi32>
    %c36_i32_43 = arith.constant 36 : i32
    %52 = vector.broadcast %c36_i32_43 : i32 to vector<8x8x1xi32>
    %53 = arith.muli %51, %52 : vector<8x8x1xi32>
    %54 = tpu.iota {dimensions = array<i32: 1>} : vector<8x8x1xi32>
    %c2_i32_44 = arith.constant 2 : i32
    %55 = vector.broadcast %c2_i32_44 : i32 to vector<8x8x1xi32>
    %56 = arith.muli %54, %55 : vector<8x8x1xi32>
    %c0_45 = arith.constant 0 : index
    %c0_46 = arith.constant 0 : index
    %c0_47 = arith.constant 0 : index
    %57 = vector.load %arg2[%c0_45, %c0_46, %c0_47] : memref<8x8x8xf32, #tpu.memory_space<vmem>>, vector<8x8x8xf32>
    tpu.vector_store %arg2[%c0_45, %c0_46, %c0_47], %50 {strides = array<i32>} : memref<8x8x8xf32, #tpu.memory_space<vmem>>, vector<8x8x8xf32>,
    %58 = vector.broadcast %53 : vector<8x8x1xi32> to vector<8x8x8xi32>
    %59 = arith.addi %49, %58 : vector<8x8x8xi32>
    %60 = vector.broadcast %56 : vector<8x8x1xi32> to vector<8x8x8xi32>
    %61 = arith.addi %59, %60 : vector<8x8x8xi32>
    %c0_48 = arith.constant 0 : index
    %c0_49 = arith.constant 0 : index
    %c0_50 = arith.constant 0 : index
    %62 = vector.load %arg3[%c0_48, %c0_49, %c0_50] : memref<8x8x8xi32, #tpu.memory_space<vmem>>, vector<8x8x8xi32>
    tpu.vector_store %arg3[%c0_48, %c0_49, %c0_50], %61 {strides = array<i32>} : memref<8x8x8xi32, #tpu.memory_space<vmem>>, vector<8x8x8xi32>,
    return
  }
  func.func @transform_0(%arg0: i32) -> (i32, i32, i32, i32, i32) {
    %c0_i32 = arith.constant 0 : i32
    %c0_i32_0 = arith.constant 0 : i32
    %c0_i32_1 = arith.constant 0 : i32
    %c0_i32_2 = arith.constant 0 : i32
    %c0_i32_3 = arith.constant 0 : i32
    return %c0_i32, %c0_i32_0, %c0_i32_1, %c0_i32_2, %arg0 : i32, i32, i32, i32, i32
  }
  func.func @transform_1(%arg0: i32) -> (i32, i32, i32) {
    %c0_i32 = arith.constant 0 : i32
    %c0_i32_0 = arith.constant 0 : i32
    %c0_i32_1 = arith.constant 0 : i32
    return %c0_i32, %c0_i32_0, %arg0 : i32, i32, i32
  }
  func.func @transform_2(%arg0: i32) -> (i32, i32, i32) {
    %c0_i32 = arith.constant 0 : i32
    %c0_i32_0 = arith.constant 0 : i32
    %c0_i32_1 = arith.constant 0 : i32
    return %c0_i32, %c0_i32_0, %arg0 : i32, i32, i32
  }
}

</mosaic_0001>

<llo_original>
// kernel: baseline_pool2d.1
$region0: #{baseline_pool2d.1}
  #allocation0 [shape = 'u32[]', space=smem, size = 0x4, offset = 0x4, fixed_abs, tag = 'smem constant byte address 0x4 - core index']
  #allocation1 [shape = 'u32[144,128]{1,0:T(1,128)}', space=vmem, size = 0x12000, scoped, tag = 'internal scratch']
  %s0 = inlined_call_operand.vmem [shape: f32[2,2,9,9,8], index: 0, kind: input, shape index: {}]
  %s1 = inlined_call_operand.vmem [shape: f32[8,8,8], index: 1, kind: output, shape index: {0}]
  %s2 = inlined_call_operand.vmem [shape: s32[8,8,8], index: 2, kind: output, shape index: {1}]
  %3 = xla_tuple %s1, %s2
  %s4 = sld [smem:[#allocation0]]
  $region22: #{baseline_pool2d.1} parent=0
    _
  %s6 = ssub.s32 1, %s4
  %s7 = scalar_select 0, %s6, %s4
  // Predicated region
  $region2: #{baseline_pool2d.1} parent=0 // pred_check
    _
  $region3: #{baseline_pool2d.1} parent=0 // pred_check_branch
    %9 = sbr.rel (0) target = $region5
  $region4: #{baseline_pool2d.1} parent=0 // pred_region
    _
  $region5: #{baseline_pool2d.1} parent=0 // pred_fallthru
    _
  %v10 = vld [vmem:[%s0] sm:$0xff]
  %v11 = vld [vmem:[%s0 + $0x10] sm:$0xff]
  %v12 = vld [vmem:[%s0 + $0x20] sm:$0xff]
  %v13 = vld [vmem:[%s0 + $0x30] sm:$0xff]
  %v14 = vld [vmem:[%s0 + $0x40] sm:$0xff]
  %v15 = vld [vmem:[%s0 + $0x50] sm:$0xff]
  %v16 = vld [vmem:[%s0 + $0x60] sm:$0xff]
  %v17 = vld [vmem:[%s0 + $0x70] sm:$0xff]
  %s18 = scalar_lea.vmem %s0, 144
  %v19 = vld [vmem:[%s18] sm:$0xff]
  %v20 = vld [vmem:[%s18 + $0x10] sm:$0xff]
  %v21 = vld [vmem:[%s18 + $0x20] sm:$0xff]
  %v22 = vld [vmem:[%s18 + $0x30] sm:$0xff]
  %v23 = vld [vmem:[%s18 + $0x40] sm:$0xff]
  %v24 = vld [vmem:[%s18 + $0x50] sm:$0xff]
  %v25 = vld [vmem:[%s18 + $0x60] sm:$0xff]
  %v26 = vld [vmem:[%s18 + $0x70] sm:$0xff]
  %vm27 = vcmp.gt.f32.partialorder %v19, %v10
  %vm28 = vcmp.gt.f32.partialorder %v20, %v11
  %vm29 = vcmp.gt.f32.partialorder %v21, %v12
  %vm30 = vcmp.gt.f32.partialorder %v22, %v13
  %vm31 = vcmp.gt.f32.partialorder %v23, %v14
  %vm32 = vcmp.gt.f32.partialorder %v24, %v15
  %vm33 = vcmp.gt.f32.partialorder %v25, %v16
  %vm34 = vcmp.gt.f32.partialorder %v26, %v17
  %v35 = vsel %vm27, 1, 0
  %v36 = vsel %vm28, 1, 0
  %v37 = vsel %vm29, 1, 0
  %v38 = vsel %vm30, 1, 0
  %v39 = vsel %vm31, 1, 0
  %v40 = vsel %vm32, 1, 0
  %v41 = vsel %vm33, 1, 0
  %v42 = vsel %vm34, 1, 0
  %v43 = vsel %vm27, %v19, %v10
  %v44 = vsel %vm28, %v20, %v11
  %v45 = vsel %vm29, %v21, %v12
  %v46 = vsel %vm30, %v22, %v13
  %v47 = vsel %vm31, %v23, %v14
  %v48 = vsel %vm32, %v24, %v15
  %v49 = vsel %vm33, %v25, %v16
  %v50 = vsel %vm34, %v26, %v17
  %v51 = vld [vmem:[%s0 + $0x1] sm:$0xff]
  %v52 = vld [vmem:[%s0 + $0x11] sm:$0xff]
  %v53 = vld [vmem:[%s0 + $0x21] sm:$0xff]
  %v54 = vld [vmem:[%s0 + $0x31] sm:$0xff]
  %v55 = vld [vmem:[%s0 + $0x41] sm:$0xff]
  %v56 = vld [vmem:[%s0 + $0x51] sm:$0xff]
  %v57 = vld [vmem:[%s0 + $0x61] sm:$0xff]
  %v58 = vld [vmem:[%s0 + $0x71] sm:$0xff]
  %vm59 = vcmp.gt.f32.partialorder %v51, %v43
  %vm60 = vcmp.gt.f32.partialorder %v52, %v44
  %vm61 = vcmp.gt.f32.partialorder %v53, %v45
  %vm62 = vcmp.gt.f32.partialorder %v54, %v46
  %vm63 = vcmp.gt.f32.partialorder %v55, %v47
  %vm64 = vcmp.gt.f32.partialorder %v56, %v48
  %vm65 = vcmp.gt.f32.partialorder %v57, %v49
  %vm66 = vcmp.gt.f32.partialorder %v58, %v50
  %v67 = vsel %vm59, 2, %v35
  %v68 = vsel %vm60, 2, %v36
  %v69 = vsel %vm61, 2, %v37
  %v70 = vsel %vm62, 2, %v38
  %v71 = vsel %vm63, 2, %v39
  %v72 = vsel %vm64, 2, %v40
  %v73 = vsel %vm65, 2, %v41
  %v74 = vsel %vm66, 2, %v42
  %v75 = vsel %vm59, %v51, %v43
  %v76 = vsel %vm60, %v52, %v44
  %v77 = vsel %vm61, %v53, %v45
  %v78 = vsel %vm62, %v54, %v46
  %v79 = vsel %vm63, %v55, %v47
  %v80 = vsel %vm64, %v56, %v48
  %v81 = vsel %vm65, %v57, %v49
  %v82 = vsel %vm66, %v58, %v50
  %s83 = scalar_lea.vmem %s0, 288
  %v84 = vld [vmem:[%s83] sm:$0xff]
  %v85 = vld [vmem:[%s83 + $0x10] sm:$0xff]
  %v86 = vld [vmem:[%s83 + $0x20] sm:$0xff]
  %v87 = vld [vmem:[%s83 + $0x30] sm:$0xff]
  %v88 = vld [vmem:[%s83 + $0x40] sm:$0xff]
  %v89 = vld [vmem:[%s83 + $0x50] sm:$0xff]
  %v90 = vld [vmem:[%s83 + $0x60] sm:$0xff]
  %v91 = vld [vmem:[%s83 + $0x70] sm:$0xff]
  %vm92 = vcmp.gt.f32.partialorder %v84, %v75
  %vm93 = vcmp.gt.f32.partialorder %v85, %v76
  %vm94 = vcmp.gt.f32.partialorder %v86, %v77
  %vm95 = vcmp.gt.f32.partialorder %v87, %v78
  %vm96 = vcmp.gt.f32.partialorder %v88, %v79
  %vm97 = vcmp.gt.f32.partialorder %v89, %v80
  %vm98 = vcmp.gt.f32.partialorder %v90, %v81
  %vm99 = vcmp.gt.f32.partialorder %v91, %v82
  %v100 = vsel %vm92, 18, %v67
  %v101 = vsel %vm93, 18, %v68
  %v102 = vsel %vm94, 18, %v69
  %v103 = vsel %vm95, 18, %v70
  %v104 = vsel %vm96, 18, %v71
  %v105 = vsel %vm97, 18, %v72
  %v106 = vsel %vm98, 18, %v73
  %v107 = vsel %vm99, 18, %v74
  %v108 = vsel %vm92, %v84, %v75
  %v109 = vsel %vm93, %v85, %v76
  %v110 = vsel %vm94, %v86, %v77
  %v111 = vsel %vm95, %v87, %v78
  %v112 = vsel %vm96, %v88, %v79
  %v113 = vsel %vm97, %v89, %v80
  %v114 = vsel %vm98, %v90, %v81
  %v115 = vsel %vm99, %v91, %v82
  %s116 = scalar_lea.vmem %s0, 432
  %v117 = vld [vmem:[%s116] sm:$0xff]
  %v118 = vld [vmem:[%s116 + $0x10] sm:$0xff]
  %v119 = vld [vmem:[%s116 + $0x20] sm:$0xff]
  %v120 = vld [vmem:[%s116 + $0x30] sm:$0xff]
  %v121 = vld [vmem:[%s116 + $0x40] sm:$0xff]
  %v122 = vld [vmem:[%s116 + $0x50] sm:$0xff]
  %v123 = vld [vmem:[%s116 + $0x60] sm:$0xff]
  %v124 = vld [vmem:[%s116 + $0x70] sm:$0xff]
  %vm125 = vcmp.gt.f32.partialorder %v117, %v108
  %vm126 = vcmp.gt.f32.partialorder %v118, %v109
  %vm127 = vcmp.gt.f32.partialorder %v119, %v110
  %vm128 = vcmp.gt.f32.partialorder %v120, %v111
  %vm129 = vcmp.gt.f32.partialorder %v121, %v112
  %vm130 = vcmp.gt.f32.partialorder %v122, %v113
  %vm131 = vcmp.gt.f32.partialorder %v123, %v114
  %vm132 = vcmp.gt.f32.partialorder %v124, %v115
  %v133 = vsel %vm125, 19, %v100
  %v134 = vsel %vm126, 19, %v101
  %v135 = vsel %vm127, 19, %v102
  %v136 = vsel %vm128, 19, %v103
  %v137 = vsel %vm129, 19, %v104
  %v138 = vsel %vm130, 19, %v105
  %v139 = vsel %vm131, 19, %v106
  %v140 = vsel %vm132, 19, %v107
  %v141 = vsel %vm125, %v117, %v108
  %v142 = vsel %vm126, %v118, %v109
  %v143 = vsel %vm127, %v119, %v110
  %v144 = vsel %vm128, %v120, %v111
  %v145 = vsel %vm129, %v121, %v112
  %v146 = vsel %vm130, %v122, %v113
  %v147 = vsel %vm131, %v123, %v114
  %v148 = vsel %vm132, %v124, %v115
  %v149 = vld [vmem:[%s83 + $0x1] sm:$0xff]
  %v150 = vld [vmem:[%s83 + $0x11] sm:$0xff]
  %v151 = vld [vmem:[%s83 + $0x21] sm:$0xff]
  %v152 = vld [vmem:[%s83 + $0x31] sm:$0xff]
  %v153 = vld [vmem:[%s83 + $0x41] sm:$0xff]
  %v154 = vld [vmem:[%s83 + $0x51] sm:$0xff]
  %v155 = vld [vmem:[%s83 + $0x61] sm:$0xff]
  %v156 = vld [vmem:[%s83 + $0x71] sm:$0xff]
  %vm157 = vcmp.gt.f32.partialorder %v149, %v141
  %vm158 = vcmp.gt.f32.partialorder %v150, %v142
  %vm159 = vcmp.gt.f32.partialorder %v151, %v143
  %vm160 = vcmp.gt.f32.partialorder %v152, %v144
  %vm161 = vcmp.gt.f32.partialorder %v153, %v145
  %vm162 = vcmp.gt.f32.partialorder %v154, %v146
  %vm163 = vcmp.gt.f32.partialorder %v155, %v147
  %vm164 = vcmp.gt.f32.partialorder %v156, %v148
  %v165 = vsel %vm157, 20, %v133
  %v166 = vsel %vm158, 20, %v134
  %v167 = vsel %vm159, 20, %v135
  %v168 = vsel %vm160, 20, %v136
  %v169 = vsel %vm161, 20, %v137
  %v170 = vsel %vm162, 20, %v138
  %v171 = vsel %vm163, 20, %v139
  %v172 = vsel %vm164, 20, %v140
  %v173 = vsel %vm157, %v149, %v141
  %v174 = vsel %vm158, %v150, %v142
  %v175 = vsel %vm159, %v151, %v143
  %v176 = vsel %vm160, %v152, %v144
  %v177 = vsel %vm161, %v153, %v145
  %v178 = vsel %vm162, %v154, %v146
  %v179 = vsel %vm163, %v155, %v147
  %v180 = vsel %vm164, %v156, %v148
  %s181 = scalar_lea.vmem %s0, 16
  %v182 = vld [vmem:[%s181] sm:$0xff]
  %v183 = vld [vmem:[%s181 + $0x10] sm:$0xff]
  %v184 = vld [vmem:[%s181 + $0x20] sm:$0xff]
  %v185 = vld [vmem:[%s181 + $0x30] sm:$0xff]
  %v186 = vld [vmem:[%s181 + $0x40] sm:$0xff]
  %v187 = vld [vmem:[%s181 + $0x50] sm:$0xff]
  %v188 = vld [vmem:[%s181 + $0x60] sm:$0xff]
  %v189 = vld [vmem:[%s181 + $0x70] sm:$0xff]
  %vm190 = vcmp.gt.f32.partialorder %v182, %v173
  %vm191 = vcmp.gt.f32.partialorder %v183, %v174
  %vm192 = vcmp.gt.f32.partialorder %v184, %v175
  %vm193 = vcmp.gt.f32.partialorder %v185, %v176
  %vm194 = vcmp.gt.f32.partialorder %v186, %v177
  %vm195 = vcmp.gt.f32.partialorder %v187, %v178
  %vm196 = vcmp.gt.f32.partialorder %v188, %v179
  %vm197 = vcmp.gt.f32.partialorder %v189, %v180
  %v198 = vsel %vm190, 36, %v165
  %v199 = vsel %vm191, 36, %v166
  %v200 = vsel %vm192, 36, %v167
  %v201 = vsel %vm193, 36, %v168
  %v202 = vsel %vm194, 36, %v169
  %v203 = vsel %vm195, 36, %v170
  %v204 = vsel %vm196, 36, %v171
  %v205 = vsel %vm197, 36, %v172
  %v206 = vsel %vm190, %v182, %v173
  %v207 = vsel %vm191, %v183, %v174
  %v208 = vsel %vm192, %v184, %v175
  %v209 = vsel %vm193, %v185, %v176
  %v210 = vsel %vm194, %v186, %v177
  %v211 = vsel %vm195, %v187, %v178
  %v212 = vsel %vm196, %v188, %v179
  %v213 = vsel %vm197, %v189, %v180
  %s214 = scalar_lea.vmem %s0, 160
  %v215 = vld [vmem:[%s214] sm:$0xff]
  %v216 = vld [vmem:[%s214 + $0x10] sm:$0xff]
  %v217 = vld [vmem:[%s214 + $0x20] sm:$0xff]
  %v218 = vld [vmem:[%s214 + $0x30] sm:$0xff]
  %v219 = vld [vmem:[%s214 + $0x40] sm:$0xff]
  %v220 = vld [vmem:[%s214 + $0x50] sm:$0xff]
  %v221 = vld [vmem:[%s214 + $0x60] sm:$0xff]
  %v222 = vld [vmem:[%s214 + $0x70] sm:$0xff]
  %vm223 = vcmp.gt.f32.partialorder %v215, %v206
  %vm224 = vcmp.gt.f32.partialorder %v216, %v207
  %vm225 = vcmp.gt.f32.partialorder %v217, %v208
  %vm226 = vcmp.gt.f32.partialorder %v218, %v209
  %vm227 = vcmp.gt.f32.partialorder %v219, %v210
  %vm228 = vcmp.gt.f32.partialorder %v220, %v211
  %vm229 = vcmp.gt.f32.partialorder %v221, %v212
  %vm230 = vcmp.gt.f32.partialorder %v222, %v213
  %v231 = vsel %vm223, 37, %v198
  %v232 = vsel %vm224, 37, %v199
  %v233 = vsel %vm225, 37, %v200
  %v234 = vsel %vm226, 37, %v201
  %v235 = vsel %vm227, 37, %v202
  %v236 = vsel %vm228, 37, %v203
  %v237 = vsel %vm229, 37, %v204
  %v238 = vsel %vm230, 37, %v205
  %v239 = vsel %vm223, %v215, %v206
  %v240 = vsel %vm224, %v216, %v207
  %v241 = vsel %vm225, %v217, %v208
  %v242 = vsel %vm226, %v218, %v209
  %v243 = vsel %vm227, %v219, %v210
  %v244 = vsel %vm228, %v220, %v211
  %v245 = vsel %vm229, %v221, %v212
  %v246 = vsel %vm230, %v222, %v213
  %v247 = vld [vmem:[%s181 + $0x1] sm:$0xff]
  %v248 = vld [vmem:[%s181 + $0x11] sm:$0xff]
  %v249 = vld [vmem:[%s181 + $0x21] sm:$0xff]
  %v250 = vld [vmem:[%s181 + $0x31] sm:$0xff]
  %v251 = vld [vmem:[%s181 + $0x41] sm:$0xff]
  %v252 = vld [vmem:[%s181 + $0x51] sm:$0xff]
  %v253 = vld [vmem:[%s181 + $0x61] sm:$0xff]
  %v254 = vld [vmem:[%s181 + $0x71] sm:$0xff]
  %vm255 = vcmp.gt.f32.partialorder %v247, %v239
  %vm256 = vcmp.gt.f32.partialorder %v248, %v240
  %vm257 = vcmp.gt.f32.partialorder %v249, %v241
  %vm258 = vcmp.gt.f32.partialorder %v250, %v242
  %vm259 = vcmp.gt.f32.partialorder %v251, %v243
  %vm260 = vcmp.gt.f32.partialorder %v252, %v244
  %vm261 = vcmp.gt.f32.partialorder %v253, %v245
  %vm262 = vcmp.gt.f32.partialorder %v254, %v246
  %v263 = vsel %vm255, 38, %v231
  %v264 = vsel %vm256, 38, %v232
  %v265 = vsel %vm257, 38, %v233
  %v266 = vsel %vm258, 38, %v234
  %v267 = vsel %vm259, 38, %v235
  %v268 = vsel %vm260, 38, %v236
  %v269 = vsel %vm261, 38, %v237
  %v270 = vsel %vm262, 38, %v238
  %v271 = vsel %vm255, %v247, %v239
  %v272 = vsel %vm256, %v248, %v240
  %v273 = vsel %vm257, %v249, %v241
  %v274 = vsel %vm258, %v250, %v242
  %v275 = vsel %vm259, %v251, %v243
  %v276 = vsel %vm260, %v252, %v244
  %v277 = vsel %vm261, %v253, %v245
  %v278 = vsel %vm262, %v254, %v246
  %v279 = vlaneseq
  %v280 = vshrl.u32 %v279, 7
  %v281 = vmul.u32 %v280, 2
  %vm282 = vcmask 64512
  %283 = vst.msk [vmem:[%s1] sm:$0xff] %vm282, %v271
  %284 = vst.msk [vmem:[%s1 + $0x8] sm:$0xff] %vm282, %v272
  %285 = vst.msk [vmem:[%s1 + $0x10] sm:$0xff] %vm282, %v273
  %286 = vst.msk [vmem:[%s1 + $0x18] sm:$0xff] %vm282, %v274
  %287 = vst.msk [vmem:[%s1 + $0x20] sm:$0xff] %vm282, %v275
  %288 = vst.msk [vmem:[%s1 + $0x28] sm:$0xff] %vm282, %v276
  %289 = vst.msk [vmem:[%s1 + $0x30] sm:$0xff] %vm282, %v277
  %290 = vst.msk [vmem:[%s1 + $0x38] sm:$0xff] %vm282, %v278
  %v291 = vadd.s32 %v264, 36
  %v292 = vadd.s32 %v265, 72
  %v293 = vadd.s32 %v266, 108
  %v294 = vadd.s32 %v267, 144
  %v295 = vadd.s32 %v268, 180
  %v296 = vadd.s32 %v269, 216
  %v297 = vadd.s32 %v270, 252
  %v298 = vadd.s32 %v263, %v281
  %v299 = vadd.s32 %v291, %v281
  %v300 = vadd.s32 %v292, %v281
  %v301 = vadd.s32 %v293, %v281
  %v302 = vadd.s32 %v294, %v281
  %v303 = vadd.s32 %v295, %v281
  %v304 = vadd.s32 %v296, %v281
  %v305 = vadd.s32 %v297, %v281
  %306 = vst.msk [vmem:[%s2] sm:$0xff] %vm282, %v298
  %307 = vst.msk [vmem:[%s2 + $0x8] sm:$0xff] %vm282, %v299
  %308 = vst.msk [vmem:[%s2 + $0x10] sm:$0xff] %vm282, %v300
  %309 = vst.msk [vmem:[%s2 + $0x18] sm:$0xff] %vm282, %v301
  %310 = vst.msk [vmem:[%s2 + $0x20] sm:$0xff] %vm282, %v302
  %311 = vst.msk [vmem:[%s2 + $0x28] sm:$0xff] %vm282, %v303
  %312 = vst.msk [vmem:[%s2 + $0x30] sm:$0xff] %vm282, %v304
  %313 = vst.msk [vmem:[%s2 + $0x38] sm:$0xff] %vm282, %v305
  // Predicated region
  $region6: #{baseline_pool2d.1} parent=0 // pred_check
    _
  $region7: #{baseline_pool2d.1} parent=0 // pred_check_branch
    %315 = sbr.rel (0) target = $region9
  $region8: #{baseline_pool2d.1} parent=0 // pred_region
    _
  $region9: #{baseline_pool2d.1} parent=0 // pred_fallthru
    _
  // Predicated region
  $region10: #{baseline_pool2d.1} parent=0 // pred_check
    _
  $region11: #{baseline_pool2d.1} parent=0 // pred_check_branch
    %317 = sbr.rel (0) target = $region13
  $region12: #{baseline_pool2d.1} parent=0 // pred_region
    _
  $region13: #{baseline_pool2d.1} parent=0 // pred_fallthru
    _
  // Predicated region
  $region14: #{baseline_pool2d.1} parent=0 // pred_check
    _
  $region15: #{baseline_pool2d.1} parent=0 // pred_check_branch
    %319 = sbr.rel (0) target = $region17
  $region16: #{baseline_pool2d.1} parent=0 // pred_region
    _
  $region17: #{baseline_pool2d.1} parent=0 // pred_fallthru
    _
  // Predicated region
  $region18: #{baseline_pool2d.1} parent=0 // pred_check
    _
  $region19: #{baseline_pool2d.1} parent=0 // pred_check_branch
    %321 = sbr.rel (0) target = $region21
  $region20: #{baseline_pool2d.1} parent=0 // pred_region
    _
  $region21: #{baseline_pool2d.1} parent=0 // pred_fallthru
    _

</llo_original>
